<compile_context>
chip_gen: v7x
topology: tpu7x:2x2x1
jax: 0.10.0
libtpu: 0.0.40
codegen_flags: <defaults>
</compile_context>

<pallas_src>
import jax
import jax.numpy as jnp
from jax.experimental import pallas as pl
from jax.experimental.pallas import tpu as pltpu

LANE = 128              # lane width (last dim of every tile)
MAX_BLOCK_ROWS = 8192   # (8192, 128) f32 = 4 MiB / tile buffer
SINGLE_BLOCK_ROWS = 256 # at/below this, one block; above, force >= 2 blocks (v7x 2 TCs)


def _round_up(x, m):
    return -(-x // m) * m


def _gating_kernel(ab_ref, t_ref, o_ref):
    # ab_ref: SMEM (2,) f32 -> [alpha, beta] already gathered for this layer.
    # t_ref / o_ref: VMEM tiles of shape (block_rows, LANE).
    # Compute in f32 regardless of storage dtype; cast only on the store.
    a = ab_ref[0]
    b = ab_ref[1]
    x = t_ref[...].astype(jnp.float32)
    o_ref[...] = jnp.cos(a * x + b).astype(o_ref.dtype)


def gating_mechanism(t, layer_idx, alphas, betas, *, donate_input=False):
    """cos(alphas[layer_idx] * t + betas[layer_idx]) via a Pallas TPU kernel."""
    orig_shape = t.shape
    orig_dtype = t.dtype

    # Hoist the parameter gather out of the kernel: two f32 scalars in SMEM.
    ab = jnp.stack([alphas[layer_idx], betas[layer_idx]]).astype(jnp.float32)

    # Flatten to a lane-dense (rows, 128) slab.  Pad only to the next LANE
    # multiple (<= 127 elems); when n % 128 == 0 this path is a free reshape.
    flat = t.reshape(-1)
    n = flat.shape[0]
    pad = (-n) % LANE
    if pad:
        flat = jnp.concatenate([flat, jnp.zeros((pad,), dtype=orig_dtype)])
    rows = (n + pad) // LANE
    slab = flat.reshape(rows, LANE)

    # Dtype-aware sublane quantum: f32 -> 8, bf16/f16 -> 16, int8/fp8 -> 32.
    itemsize = jnp.dtype(orig_dtype).itemsize
    sub = max(8, 32 // max(itemsize, 1))

    if rows <= SINGLE_BLOCK_ROWS:
        # Tiny input: one block equal to the full slab (block == full array
        # dims, so no (8,128) divisibility requirement and no masking).
        block_rows = rows
    else:
        # At least 2 grid steps (so v7x's megacore can shard the parallel
        # axis across both TensorCores), capped at a 4 MiB f32 tile so the
        # double-buffered working set stays inside v7x's scoped VMEM budget.
        block_rows = min(_round_up(pl.cdiv(rows, 2), sub), MAX_BLOCK_ROWS)
    num_blocks = pl.cdiv(rows, block_rows)

    extra = {}
    if donate_input:
        # Alias the slab input to the output.  Only safe when the caller
        # donates t (dead after this call) -- not the default PyTorch
        # forward semantics, hence gated behind a flag.
        extra["input_output_aliases"] = {1: 0}

    out_slab = pl.pallas_call(
        _gating_kernel,
        out_shape=jax.ShapeDtypeStruct((rows, LANE), orig_dtype),
        grid=(num_blocks,),
        in_specs=[
            pl.BlockSpec(memory_space=pltpu.MemorySpace.SMEM),       # [alpha, beta]
            pl.BlockSpec((block_rows, LANE), lambda i: (i, 0)),      # t slab
        ],
        out_specs=pl.BlockSpec((block_rows, LANE), lambda i: (i, 0)),
        compiler_params=pltpu.CompilerParams(
            dimension_semantics=("parallel",)),
        **extra,
    )(ab, slab)

    if pad:
        return out_slab.reshape(-1)[:n].reshape(orig_shape)
    return out_slab.reshape(orig_shape)


if __name__ == "__main__":
    key = jax.random.PRNGKey(0)
    k_alpha, k_beta, k_t, k_t2 = jax.random.split(key, 4)

    num_layers = 4
    # Deterministic "randn" parameter init (mirrors torch.randn(num_layers))
    alphas = jax.random.normal(k_alpha, (num_layers,), dtype=jnp.float32)
    betas = jax.random.normal(k_beta, (num_layers,), dtype=jnp.float32)

    # Small input consistent with the forward; H=128 hits the zero-copy path.
    B, S, H = 2, 8, 128
    t = jax.random.normal(k_t, (B, S, H), dtype=jnp.float32)
    layer_idx = 2

    out = jax.block_until_ready(gating_mechanism(t, layer_idx, alphas, betas))
    ref = jnp.cos(alphas[layer_idx] * t + betas[layer_idx])
    assert out.shape == t.shape and out.dtype == t.dtype
    assert jnp.allclose(out, ref, atol=1e-5, rtol=1e-5)

    # Non-128-aligned shape: exercises the <=127-element pad / slice path.
    t2 = jax.random.normal(k_t2, (5, 37), dtype=jnp.float32)
    out2 = jax.block_until_ready(gating_mechanism(t2, 1, alphas, betas))
    ref2 = jnp.cos(alphas[1] * t2 + betas[1])
    assert out2.shape == t2.shape and out2.dtype == t2.dtype
    assert jnp.allclose(out2, ref2, atol=1e-5, rtol=1e-5)

    print("KERNEL_OK")
</pallas_src>

<mosaic_0001>
module attributes {stable_mosaic.version = 11 : i64} {
  func.func @_gating_kernel(%arg0: i32, %arg1: memref<2xf32, #tpu.memory_space<smem>>, %arg2: memref<16x128xf32, #tpu.memory_space<vmem>>, %arg3: memref<16x128xf32, #tpu.memory_space<vmem>>) attributes {dimension_semantics = [#tpu.dimension_semantics<parallel>], iteration_bounds = array<i64: 1>, scalar_prefetch = 0 : i64, scratch_operands = 0 : i64, tpu.core_type = #tpu.core_type<tc>, window_params = [{transform_indices = @transform_0, window_bounds = array<i64: 2>}, {transform_indices = @transform_1, window_bounds = array<i64: 16, 128>}, {transform_indices = @transform_2, window_bounds = array<i64: 16, 128>}]} {
    %c0 = arith.constant 0 : index
    %0 = memref.load %arg1[%c0] : memref<2xf32, #tpu.memory_space<smem>>
    %c1 = arith.constant 1 : index
    %1 = memref.load %arg1[%c1] : memref<2xf32, #tpu.memory_space<smem>>
    %c0_0 = arith.constant 0 : index
    %c0_1 = arith.constant 0 : index
    %2 = vector.load %arg2[%c0_0, %c0_1] : memref<16x128xf32, #tpu.memory_space<vmem>>, vector<16x128xf32>
    %3 = vector.broadcast %0 : f32 to vector<16x128xf32>
    %4 = arith.mulf %3, %2 : vector<16x128xf32>
    %5 = vector.broadcast %1 : f32 to vector<16x128xf32>
    %6 = arith.addf %4, %5 : vector<16x128xf32>
    %7 = math.cos %6 : vector<16x128xf32>
    %c0_2 = arith.constant 0 : index
    %c0_3 = arith.constant 0 : index
    %8 = vector.load %arg3[%c0_2, %c0_3] : memref<16x128xf32, #tpu.memory_space<vmem>>, vector<16x128xf32>
    tpu.vector_store %arg3[%c0_2, %c0_3], %7 {strides = array<i32>} : memref<16x128xf32, #tpu.memory_space<vmem>>, vector<16x128xf32>,
    return
  }
  func.func @transform_0(%arg0: i32) -> i32 {
    %c0_i32 = arith.constant 0 : i32
    %c0_i32_0 = arith.constant 0 : i32
    return %c0_i32 : i32
  }
  func.func @transform_1(%arg0: i32) -> (i32, i32) {
    %c0_i32 = arith.constant 0 : i32
    %c0_i32_0 = arith.constant 0 : i32
    return %arg0, %c0_i32 : i32, i32
  }
  func.func @transform_2(%arg0: i32) -> (i32, i32) {
    %c0_i32 = arith.constant 0 : i32
    %c0_i32_0 = arith.constant 0 : i32
    return %arg0, %c0_i32 : i32, i32
  }
}

</mosaic_0001>

<llo_original>
// kernel: tpu_custom_call.1
$region0: #{tpu_custom_call.1}
  #allocation0 [shape = 'u32[]', space=smem, size = 0x4, offset = 0x4, fixed_abs, tag = 'smem constant byte address 0x4 - core index']
  #allocation1 [shape = 'u32[144,128]{1,0:T(1,128)}', space=vmem, size = 0x12000, scoped, tag = 'internal scratch']
  %s0 = inlined_call_operand.hbm [shape: f32[2], index: 0, kind: input, shape index: {}]
  %s1 = inlined_call_operand.hbm [shape: f32[16,128], index: 1, kind: input, shape index: {}]
  %s2 = inlined_call_operand.hbm [shape: f32[16,128], index: 2, kind: output, shape index: {}]
  %s3 = sld [smem:[#allocation0]]
  $region26: #{tpu_custom_call.1} parent=0
    _
  %s5 = ssub.s32 1, %s3
  %s6 = scalar_select 0, %s5, %s3
  $region1: #{tpu_custom_call.1} parent=0
    #allocation2 [shape = 'u8[512]{0}', space=smem, size = 0x200, scoped, tag = 'input window, operand 0, single buffered']
    #allocation3 [shape = 's32[1]{0}', space=sflag, size = 0x4, scoped, tag = 'scoped memory for tpu_custom_call.1']
    #allocation4 [shape = 's32[1]{0}', space=sflag, size = 0x4, scoped, tag = 'scoped memory for tpu_custom_call.1']
    #allocation5 [shape = 's32[1]{0}', space=sflag, size = 0x4, scoped, tag = 'scoped memory for tpu_custom_call.1']
    #allocation6 [shape = 'u8[8192]{0}', space=vmem, size = 0x2000, scoped, tag = 'input window, operand 1, single buffered']
    #allocation7 [shape = 'u8[8192]{0}', space=vmem, size = 0x2000, scoped, tag = 'output window, operand 0, single buffered']
    %7 = vsyncpa [#allocation5], 0
    %8 = vsyncpa [#allocation3], 0
    %9 = vsyncpa [#allocation4], 0
    // Predicated region
    $region2: #{tpu_custom_call.1} parent=1 // pred_check
      _
    $region3: #{tpu_custom_call.1} parent=1 // pred_check_branch
      %11 = sbr.rel (0) target = $region5
    $region4: #{tpu_custom_call.1} parent=1 // pred_region
      %s13 = ssub.s32 16, 16
      %14 = vsyncadd [#allocation5], %s13
      %17 = dma.hbm_to_smem %s0, 16, [#allocation2], [#allocation5]
    $region5: #{tpu_custom_call.1} parent=1 // pred_fallthru
      _
    // Predicated region
    $region6: #{tpu_custom_call.1} parent=1 // pred_check
      _
    $region7: #{tpu_custom_call.1} parent=1 // pred_check_branch
      %19 = sbr.rel (0) target = $region9
    $region8: #{tpu_custom_call.1} parent=1 // pred_region
      %s21 = ssub.s32 256, 256
      %22 = vsyncadd [#allocation3], %s21
      %s23 = sshll.u32 [#allocation6], 4
      %s24 = int_to_ptr.vmem [resolvable:$true] %s23
      %29 = dma.hbm_to_vmem [thread:$0]  %s1, 256, %s24, [#allocation3], 128, 128, 8
    $region9: #{tpu_custom_call.1} parent=1 // pred_fallthru
      _
    // Predicated region
    $region10: #{tpu_custom_call.1} parent=1 // pred_check
      _
    $region11: #{tpu_custom_call.1} parent=1 // pred_check_branch
      %31 = sbr.rel (0) target = $region13
    $region12: #{tpu_custom_call.1} parent=1 // pred_region
      %32 = dma.done [#allocation5], 16
    $region13: #{tpu_custom_call.1} parent=1 // pred_fallthru
      _
    // Predicated region
    $region14: #{tpu_custom_call.1} parent=1 // pred_check
      _
    $region15: #{tpu_custom_call.1} parent=1 // pred_check_branch
      %34 = sbr.rel (0) target = $region17
    $region16: #{tpu_custom_call.1} parent=1 // pred_region
      %35 = dma.done [#allocation3], 256
    $region17: #{tpu_custom_call.1} parent=1 // pred_fallthru
      _
    %36 = sfence
    %s37 = sld [smem:[#allocation2]]
    %s38 = sld [smem:[#allocation2 + $0x1]]
    %v39 = vld [vmem:[#allocation6] sm:$0xff]
    %v40 = vld [vmem:[#allocation6 + $0x8] sm:$0xff]
    %v41 = vstv %s37
    %v42 = vmul.f32 %v41, %v39
    %v43 = vmul.f32 %v41, %v40
    %v44 = vstv %s38
    %v45 = vadd.f32 %v42, %v44
    %v46 = vadd.f32 %v43, %v44
    %v47 = vand.u32 2147483647, %v45
    %vm48 = vcmp.le.f32.partialorder %v47, 0.7853982
    %vm49 = vcmp.lt.s32.totalorder %v45, 0
    %v50 = vand.u32 %v45, 2139095040
    %v51 = vshrl.u32 %v50, 23
    %v52 = vsub.s32 %v51, 127
    %v53 = vand.u32 2147483647, %v45
    %v54 = vand.u32 %v53, 8388607
    %v55 = vor.u32 %v54, 8388608
    %v56 = vsub.s32 0, %v55
    %v57 = vadd.s32 %v52, 1
    %vm58 = vcmp.gt.s32.totalorder %v57, 0
    %v59 = vsel %vm58, %v57, 0
    %v60 = vshrl.u32 %v59, 5
    %v61 = vand.u32 %v59, 31
    %v62 = vsub.s32 32, %v61
    %v63 = vshrl.u32 683565275, %v62
    %v64 = vshll.u32 683565275, %v61
    %v65 = vshrl.u32 2475754826, %v62
    %v66 = vor.u32 %v64, %v65
    %v67 = vshll.u32 2475754826, %v61
    %v68 = vshrl.u32 2131351028, %v62
    %v69 = vor.u32 %v67, %v68
    %v70 = vshll.u32 2131351028, %v61
    %v71 = vshrl.u32 2102212464, %v62
    %v72 = vor.u32 %v70, %v71
    %v73 = vshll.u32 2102212464, %v61
    %v74 = vshrl.u32 920167782, %v62
    %v75 = vor.u32 %v73, %v74
    %v76 = vshll.u32 920167782, %v61
    %v77 = vshrl.u32 1326507024, %v62
    %v78 = vor.u32 %v76, %v77
    %vm79 = vcmp.lt.s32.totalorder %v60, 1
    %vm80 = vcmp.lt.s32.totalorder %v60, 2
    %vm81 = vcmp.lt.s32.totalorder %v60, 3
    %vm82 = vcmp.lt.s32.totalorder %v60, 4
    %v83 = vsel %vm79, %v63, %v66
    %v84 = vsel %vm82, %v72, 2102212464
    %v85 = vsel %vm81, %v69, %v84
    %v86 = vsel %vm80, %v83, %v85
    %v87 = vsel %vm79, %v66, %v69
    %v88 = vsel %vm82, %v75, 920167782
    %v89 = vsel %vm81, %v72, %v88
    %v90 = vsel %vm80, %v87, %v89
    %v91 = vsel %vm79, %v69, %v72
    %v92 = vsel %vm82, %v78, 1326507024
    %v93 = vsel %vm81, %v75, %v92
    %v94 = vsel %vm80, %v91, %v93
    %v95 = vshll.u32 %v55, 8
    %v96 = vmul.u32.u64.compose %v95, %v94
    %v97 = vextract.low.u32 %v96
    %v98 = vextract.high.u32 %v96
    %v99 = vmul.u32.u64.compose %v95, %v90
    %v100 = vextract.low.u32 %v99
    %v101 = vextract.high.u32 %v99
    %v102 = vmul.u32 %v95, %v86
    %v103 = vadd.s32 %v98, %v100
    %vm104 = vc.u32 %v98, %v100
    %v105 = vadd.s32 %v101, 1
    %v106 = vsel %vm104, %v105, %v101
    %v107 = vadd.s32 %v102, %v106
    %v108 = vadd.s32 %v107, 536870912
    %v109 = vshrl.u32 %v108, 30
    %v110 = vshll.u32 %v109, 30
    %v111 = vsub.s32 %v107, %v110
    %vm112 = vcmp.lt.s32.totalorder %v111, 0
    %v113 = vsub.s32 0, %v111
    %v114 = vsel %vm112, %v113, %v111
    %v115 = vclz %v114
    %v116 = vsub.s32 %v115, 2
    %vm117 = vcmp.gt.s32.totalorder 0, %v116
    %v118 = vsel %vm117, 0, %v116
    %v119 = vsub.s32 32, %v118
    %v120 = vshll.u32 %v111, %v118
    %v121 = vshrl.u32 %v103, %v119
    %v122 = vor.u32 %v120, %v121
    %v123 = vsub.s32 4294967266, %v118
    %v124 = vadd.s32 %v123, 127
    %v125 = vshll.u32 %v124, 23
    %v126 = vor.u32 4788187, %v125
    %v127 = vand.u32 2147483647, %v126
    %v129 = vcvt.s32.f32 %v122
    %v130 = vmul.f32 %v129, %v127
    %v131 = vxor.u32 %v130, 2147483648
    %v132 = vsel %vm49, %v131, %v130
    %v133 = vsub.s32 4, %v109
    %v134 = vsel %vm49, %v133, %v109
    %v135 = vsel %vm48, %v45, %v132
    %v136 = vsel %vm48, 0, %v134
    %v137 = vcosq.f32.pop %v135
    %v138 = vsinq.f32.pop %v135
    %vm139 = vweird.f32 %v45
    %v140 = vand.u32 %v136, 3
    %vm141 = vcmp.lt.s32.totalorder %v140, 2
    %vm142 = vcmp.eq.s32.totalorder %v140, 0
    %v143 = vxor.u32 %v138, 2147483648
    %v144 = vsel %vm142, %v137, %v143
    %vm145 = vcmp.eq.s32.totalorder %v140, 2
    %v146 = vxor.u32 %v137, 2147483648
    %v147 = vsel %vm145, %v146, %v138
    %v148 = vsel %vm141, %v144, %v147
    %v149 = vsel %vm139, nan, %v148
    %v150 = vand.u32 2147483647, %v46
    %vm151 = vcmp.le.f32.partialorder %v150, 0.7853982
    %vm152 = vcmp.lt.s32.totalorder %v46, 0
    %v153 = vand.u32 %v46, 2139095040
    %v154 = vshrl.u32 %v153, 23
    %v155 = vsub.s32 %v154, 127
    %v156 = vand.u32 2147483647, %v46
    %v157 = vand.u32 %v156, 8388607
    %v158 = vor.u32 %v157, 8388608
    %v159 = vsub.s32 0, %v158
    %v160 = vadd.s32 %v155, 1
    %vm161 = vcmp.gt.s32.totalorder %v160, 0
    %v162 = vsel %vm161, %v160, 0
    %v163 = vshrl.u32 %v162, 5
    %v164 = vand.u32 %v162, 31
    %v165 = vsub.s32 32, %v164
    %v166 = vshrl.u32 683565275, %v165
    %v167 = vshll.u32 683565275, %v164
    %v168 = vshrl.u32 2475754826, %v165
    %v169 = vor.u32 %v167, %v168
    %v170 = vshll.u32 2475754826, %v164
    %v171 = vshrl.u32 2131351028, %v165
    %v172 = vor.u32 %v170, %v171
    %v173 = vshll.u32 2131351028, %v164
    %v174 = vshrl.u32 2102212464, %v165
    %v175 = vor.u32 %v173, %v174
    %v176 = vshll.u32 2102212464, %v164
    %v177 = vshrl.u32 920167782, %v165
    %v178 = vor.u32 %v176, %v177
    %v179 = vshll.u32 920167782, %v164
    %v180 = vshrl.u32 1326507024, %v165
    %v181 = vor.u32 %v179, %v180
    %vm182 = vcmp.lt.s32.totalorder %v163, 1
    %vm183 = vcmp.lt.s32.totalorder %v163, 2
    %vm184 = vcmp.lt.s32.totalorder %v163, 3
    %vm185 = vcmp.lt.s32.totalorder %v163, 4
    %v186 = vsel %vm182, %v166, %v169
    %v187 = vsel %vm185, %v175, 2102212464
    %v188 = vsel %vm184, %v172, %v187
    %v189 = vsel %vm183, %v186, %v188
    %v190 = vsel %vm182, %v169, %v172
    %v191 = vsel %vm185, %v178, 920167782
    %v192 = vsel %vm184, %v175, %v191
    %v193 = vsel %vm183, %v190, %v192
    %v194 = vsel %vm182, %v172, %v175
    %v195 = vsel %vm185, %v181, 1326507024
    %v196 = vsel %vm184, %v178, %v195
    %v197 = vsel %vm183, %v194, %v196
    %v198 = vshll.u32 %v158, 8
    %v199 = vmul.u32.u64.compose %v198, %v197
    %v200 = vextract.low.u32 %v199
    %v201 = vextract.high.u32 %v199
    %v202 = vmul.u32.u64.compose %v198, %v193
    %v203 = vextract.low.u32 %v202
    %v204 = vextract.high.u32 %v202
    %v205 = vmul.u32 %v198, %v189
    %v206 = vadd.s32 %v201, %v203
    %vm207 = vc.u32 %v201, %v203
    %v208 = vadd.s32 %v204, 1
    %v209 = vsel %vm207, %v208, %v204
    %v210 = vadd.s32 %v205, %v209
    %v211 = vadd.s32 %v210, 536870912
    %v212 = vshrl.u32 %v211, 30
    %v213 = vshll.u32 %v212, 30
    %v214 = vsub.s32 %v210, %v213
    %vm215 = vcmp.lt.s32.totalorder %v214, 0
    %v216 = vsub.s32 0, %v214
    %v217 = vsel %vm215, %v216, %v214
    %v218 = vclz %v217
    %v219 = vsub.s32 %v218, 2
    %vm220 = vcmp.gt.s32.totalorder 0, %v219
    %v221 = vsel %vm220, 0, %v219
    %v222 = vsub.s32 32, %v221
    %v223 = vshll.u32 %v214, %v221
    %v224 = vshrl.u32 %v206, %v222
    %v225 = vor.u32 %v223, %v224
    %v226 = vsub.s32 4294967266, %v221
    %v227 = vadd.s32 %v226, 127
    %v228 = vshll.u32 %v227, 23
    %v229 = vor.u32 4788187, %v228
    %v230 = vand.u32 2147483647, %v229
    %v232 = vcvt.s32.f32 %v225
    %v233 = vmul.f32 %v232, %v230
    %v234 = vxor.u32 %v233, 2147483648
    %v235 = vsel %vm152, %v234, %v233
    %v236 = vsub.s32 4, %v212
    %v237 = vsel %vm152, %v236, %v212
    %v238 = vsel %vm151, %v46, %v235
    %v239 = vsel %vm151, 0, %v237
    %v240 = vcosq.f32.pop %v238
    %v241 = vsinq.f32.pop %v238
    %vm242 = vweird.f32 %v46
    %v243 = vand.u32 %v239, 3
    %vm244 = vcmp.lt.s32.totalorder %v243, 2
    %vm245 = vcmp.eq.s32.totalorder %v243, 0
    %v246 = vxor.u32 %v241, 2147483648
    %v247 = vsel %vm245, %v240, %v246
    %vm248 = vcmp.eq.s32.totalorder %v243, 2
    %v249 = vxor.u32 %v240, 2147483648
    %v250 = vsel %vm248, %v249, %v241
    %v251 = vsel %vm244, %v247, %v250
    %v252 = vsel %vm242, nan, %v251
    %253 = vst [vmem:[#allocation7] sm:$0xff] %v149
    %254 = vst [vmem:[#allocation7 + $0x8] sm:$0xff] %v252
    // Predicated region
    $region18: #{tpu_custom_call.1} parent=1 // pred_check
      _
    $region19: #{tpu_custom_call.1} parent=1 // pred_check_branch
      %256 = sbr.rel (0) target = $region21
    $region20: #{tpu_custom_call.1} parent=1 // pred_region
      %s258 = ssub.s32 256, 256
      %259 = vsyncadd [#allocation4], %s258
      %s260 = sshll.u32 [#allocation7], 4
      %s261 = int_to_ptr.vmem [resolvable:$true] %s260
      %266 = dma.vmem_to_hbm [thread:$0]  %s261, 256, %s2, [#allocation4], 128, 128, 8
    $region21: #{tpu_custom_call.1} parent=1 // pred_fallthru
      _
    // Predicated region
    $region22: #{tpu_custom_call.1} parent=1 // pred_check
      _
    $region23: #{tpu_custom_call.1} parent=1 // pred_check_branch
      %268 = sbr.rel (0) target = $region25
    $region24: #{tpu_custom_call.1} parent=1 // pred_region
      %269 = dma.done [#allocation4], 256
    $region25: #{tpu_custom_call.1} parent=1 // pred_fallthru
      _
    %270 = vsyncpa [#allocation3], 1
    %271 = vsyncpa [#allocation4], 1
    %272 = vsyncpa [#allocation5], 1

</llo_original>
